<compile_context>
chip_gen: v5e
topology: v5e:2x2
jax: 0.10.0
libtpu: 0.0.40
codegen_flags: <defaults>
</compile_context>

<pallas_src>
import numpy as np
import jax
import jax.numpy as jnp
from jax.experimental import pallas as pl
from jax.experimental.pallas import tpu as pltpu


def cnn_kernel(x_ref, wc_ref, bc_ref, wl_ref, bl_ref, a_ref, o_ref):
    """One row-block of the full forward pass.

    x_ref  : (Rb, C*L)  f32 VMEM  flattened input rows (raw, unpadded)
    wc_ref : (C*L, Lp)  f32 VMEM  Toeplitz conv weight (Lp = L_out padded to 8)
    bc_ref : (1,)       f32 SMEM  Conv1d bias (scalar)
    wl_ref : (Lp, F)    f32 VMEM  Linear weight, pre-transposed, zero-padded rows
    bl_ref : (1, F)     f32 VMEM  Linear bias
    a_ref  : (1,)       f32 SMEM  PReLU parameter (single shared scalar)
    o_ref  : (Rb, F)    f32 VMEM
    """
    # Conv1d as one MXU matmul (+ scalar bias), Tanh on the EUP.
    y = jnp.tanh(jnp.dot(x_ref[...], wc_ref[...],
                         preferred_element_type=jnp.float32) + bc_ref[0])
    # Linear on the MXU + bias. Padded columns of y (tanh(b_conv)) hit the
    # zero rows of wl_ref, so they contribute nothing.
    z = jnp.dot(y, wl_ref[...], preferred_element_type=jnp.float32) + bl_ref[...]
    # PReLU with a single shared parameter.
    a = a_ref[0]
    o_ref[...] = jnp.where(z > 0, z, a * z)


def _toeplitz_placement(C, L, K, L_out, L_pad):
    """Constant one-hot placement tensor P: (C*K, C*L, L_pad), built in numpy.

    W[r, t] = sum_p w_flat[p] * P[p, r, t] gives the Toeplitz matrix such that
    x2d @ W == conv1d(x) (bias excluded; it is added in-kernel).
    """
    P = np.zeros((C * K, C * L, L_pad), np.float32)
    for c in range(C):
        for k in range(K):
            for t in range(L_out):
                P[c * K + k, c * L + t + k, t] = 1.0
    return P


def prepare_cnn_params(w_conv, b_conv, w_lin, b_lin, a_prelu, *, C, L):
    """One-time (init-time) preprocessing — call once, reuse across forwards.

    w_conv : (C, K)   Conv1d weight (out_channels=1 squeezed)
    b_conv : (1,)     Conv1d bias
    w_lin  : (F, L_out) Linear weight (PyTorch layout: out, in)
    b_lin  : (F,)     Linear bias
    a_prelu: (1,)     PReLU parameter
    """
    K = w_conv.shape[-1]
    L_out = L - K + 1
    F = w_lin.shape[0]
    L_pad = -(-L_out // 8) * 8          # sublane-align the conv output length

    # Dense contraction against a constant placement tensor (no scatter).
    P = jnp.asarray(_toeplitz_placement(C, L, K, L_out, L_pad))
    wc = jnp.einsum("p,prt->rt",
                    w_conv.reshape(-1).astype(jnp.float32), P)   # (C*L, L_pad)

    # Linear weight transposed; zero rows for the padded conv columns.
    wl = jnp.pad(w_lin.T.astype(jnp.float32),
                 ((0, L_pad - L_out), (0, 0)))                   # (L_pad, F)
    bl = b_lin.astype(jnp.float32).reshape(1, F)

    return dict(
        wc=wc,
        bc=b_conv.astype(jnp.float32).reshape(1),
        wl=wl,
        bl=bl,
        a=a_prelu.astype(jnp.float32).reshape(1),
    )


_MAX_ROW_BLOCK = 256  # rows per grid step for large batches


def cnn_forward(params, x):
    """x: (N, C, L) float32 -> (N, 1, F), matching the PyTorch module output."""
    N, C, L = x.shape
    CL = C * L
    L_pad, F = params["wl"].shape

    # Contiguous flatten — free (metadata-only) reshape, no padding copies.
    x2d = x.reshape(N, CL).astype(jnp.float32)

    rows_blk = N if N <= _MAX_ROW_BLOCK else _MAX_ROW_BLOCK
    grid = (pl.cdiv(N, rows_blk),)

    cost = pl.CostEstimate(
        flops=2 * N * (CL * L_pad + L_pad * F),
        transcendentals=N * L_pad,
        bytes_accessed=4 * (N * CL + CL * L_pad + L_pad * F + F + N * F + 2),
    )

    out = pl.pallas_call(
        cnn_kernel,
        out_shape=jax.ShapeDtypeStruct((N, F), jnp.float32),
        grid=grid,
        in_specs=[
            pl.BlockSpec((rows_blk, CL), lambda i: (i, 0)),      # x row block
            pl.BlockSpec((CL, L_pad), lambda i: (0, 0)),         # conv Toeplitz (resident)
            pl.BlockSpec(memory_space=pltpu.MemorySpace.SMEM),   # conv bias scalar
            pl.BlockSpec((L_pad, F), lambda i: (0, 0)),          # linear weight (resident)
            pl.BlockSpec((1, F), lambda i: (0, 0)),              # linear bias (resident)
            pl.BlockSpec(memory_space=pltpu.MemorySpace.SMEM),   # prelu scalar
        ],
        out_specs=pl.BlockSpec((rows_blk, F), lambda i: (i, 0)),
        compiler_params=pltpu.CompilerParams(
            dimension_semantics=("parallel",)),                  # shards rows on v7x
        cost_estimate=cost,
    )(x2d, params["wc"], params["bc"], params["wl"], params["bl"], params["a"])

    # Conv1d kept its size-1 channel dim in PyTorch; reshape is metadata-only.
    return out.reshape(N, 1, F)


def cnn_reference(x, w_conv, b_conv, w_lin, b_lin, a_prelu):
    """Pure-JAX reference for verification (mirrors PyTorch semantics)."""
    N, C, L = x.shape
    K = w_conv.shape[1]
    L_out = L - K + 1
    patches = jnp.stack([x[:, :, k:k + L_out] for k in range(K)], axis=-1)  # (N,C,L_out,K)
    conv = jnp.einsum("nclk,ck->nl", patches, w_conv) + b_conv[0]
    t = jnp.tanh(conv)
    z = t @ w_lin.T + b_lin[None, :]
    z = jnp.where(z > 0, z, a_prelu[0] * z)
    return z.reshape(N, 1, -1)


if __name__ == "__main__":
    # args: data_dim=4, max_lag=3, batch_size=16 (=> K=4, L=16, L_out=13, F=64)
    data_dim, max_lag, seq_len = 4, 3, 16
    N = 2
    K = max_lag + 1
    L_out = seq_len - max_lag
    F = data_dim * data_dim * K

    key = jax.random.PRNGKey(0)
    kx, kw1, kb1, kw2, kb2 = jax.random.split(key, 5)

    x = jax.random.normal(kx, (N, data_dim, seq_len), dtype=jnp.float32)
    # Deterministic synthetic parameters (shapes match nn.Conv1d / nn.Linear / nn.PReLU)
    w_conv = 0.1 * jax.random.normal(kw1, (data_dim, K), dtype=jnp.float32)   # (1, C, K) squeezed
    b_conv = 0.1 * jax.random.normal(kb1, (1,), dtype=jnp.float32)
    w_lin = 0.1 * jax.random.normal(kw2, (F, L_out), dtype=jnp.float32)       # Linear weight (out, in)
    b_lin = 0.1 * jax.random.normal(kb2, (F,), dtype=jnp.float32)
    a_prelu = jnp.array([0.25], dtype=jnp.float32)                            # PReLU default init

    # One-time init: all weight munging hoisted out of the per-call path.
    params = prepare_cnn_params(w_conv, b_conv, w_lin, b_lin, a_prelu,
                                C=data_dim, L=seq_len)

    fwd = jax.jit(cnn_forward)
    out = jax.block_until_ready(fwd(params, x))

    ref = cnn_reference(x, w_conv, b_conv, w_lin, b_lin, a_prelu)
    assert out.shape == (N, 1, F), out.shape
    assert jnp.allclose(out, ref, atol=1e-5, rtol=1e-5), "mismatch vs reference"

    print("KERNEL_OK")
</pallas_src>

<mosaic_0001>
module attributes {stable_mosaic.version = 11 : i64} {
  func.func @cnn_kernel(%arg0: i32, %arg1: memref<2x64xf32, #tpu.memory_space<vmem>>, %arg2: memref<64x16xf32, #tpu.memory_space<vmem>>, %arg3: memref<1xf32, #tpu.memory_space<smem>>, %arg4: memref<16x64xf32, #tpu.memory_space<vmem>>, %arg5: memref<1x64xf32, #tpu.memory_space<vmem>>, %arg6: memref<1xf32, #tpu.memory_space<smem>>, %arg7: memref<2x64xf32, #tpu.memory_space<vmem>>) attributes {dimension_semantics = [#tpu.dimension_semantics<parallel>], iteration_bounds = array<i64: 1>, scalar_prefetch = 0 : i64, scratch_operands = 0 : i64, tpu.core_type = #tpu.core_type<tc>, window_params = [{transform_indices = @transform_0, window_bounds = array<i64: 2, 64>}, {pipeline_mode = #tpu.pipeline_mode<synchronous>, transform_indices = @transform_1, window_bounds = array<i64: 64, 16>}, {transform_indices = @transform_2, window_bounds = array<i64: 1>}, {pipeline_mode = #tpu.pipeline_mode<synchronous>, transform_indices = @transform_3, window_bounds = array<i64: 16, 64>}, {pipeline_mode = #tpu.pipeline_mode<synchronous>, transform_indices = @transform_4, window_bounds = array<i64: 1, 64>}, {transform_indices = @transform_5, window_bounds = array<i64: 1>}, {transform_indices = @transform_6, window_bounds = array<i64: 2, 64>}]} {
    %c0 = arith.constant 0 : index
    %c0_0 = arith.constant 0 : index
    %0 = vector.load %arg1[%c0, %c0_0] : memref<2x64xf32, #tpu.memory_space<vmem>>, vector<2x64xf32>
    %c0_1 = arith.constant 0 : index
    %c0_2 = arith.constant 0 : index
    %1 = vector.load %arg2[%c0_1, %c0_2] : memref<64x16xf32, #tpu.memory_space<vmem>>, vector<64x16xf32>
    %cst = arith.constant dense<0.000000e+00> : vector<2x16xf32>
    %2 = tpu.matmul %0, %1, %cst {dimension_numbers = #tpu.dot_dimension_numbers<[1], [0], [0], [1], [0, 0, 1, 1], [], []>} : vector<2x64xf32>, vector<64x16xf32>, vector<2x16xf32> -> vector<2x16xf32>
    %c0_3 = arith.constant 0 : index
    %3 = memref.load %arg3[%c0_3] : memref<1xf32, #tpu.memory_space<smem>>
    %4 = vector.broadcast %3 : f32 to vector<2x16xf32>
    %5 = arith.addf %2, %4 : vector<2x16xf32>
    %6 = math.tanh %5 : vector<2x16xf32>
    %c0_4 = arith.constant 0 : index
    %c0_5 = arith.constant 0 : index
    %7 = vector.load %arg4[%c0_4, %c0_5] : memref<16x64xf32, #tpu.memory_space<vmem>>, vector<16x64xf32>
    %cst_6 = arith.constant dense<0.000000e+00> : vector<2x64xf32>
    %8 = tpu.matmul %6, %7, %cst_6 {dimension_numbers = #tpu.dot_dimension_numbers<[1], [0], [0], [1], [0, 0, 1, 1], [], []>} : vector<2x16xf32>, vector<16x64xf32>, vector<2x64xf32> -> vector<2x64xf32>
    %c0_7 = arith.constant 0 : index
    %c0_8 = arith.constant 0 : index
    %9 = vector.load %arg5[%c0_7, %c0_8] : memref<1x64xf32, #tpu.memory_space<vmem>>, vector<1x64xf32>
    %10 = vector.broadcast %9 : vector<1x64xf32> to vector<2x64xf32>
    %11 = arith.addf %8, %10 : vector<2x64xf32>
    %c0_9 = arith.constant 0 : index
    %12 = memref.load %arg6[%c0_9] : memref<1xf32, #tpu.memory_space<smem>>
    %cst_10 = arith.constant 0.000000e+00 : f32
    %13 = vector.broadcast %cst_10 : f32 to vector<2x64xf32>
    %14 = arith.cmpf ogt, %11, %13 : vector<2x64xf32>
    %15 = vector.broadcast %12 : f32 to vector<2x64xf32>
    %16 = arith.mulf %15, %11 : vector<2x64xf32>
    %17 = arith.select %14, %11, %16 : vector<2x64xi1>, vector<2x64xf32>
    %c0_11 = arith.constant 0 : index
    %c0_12 = arith.constant 0 : index
    %18 = vector.load %arg7[%c0_11, %c0_12] : memref<2x64xf32, #tpu.memory_space<vmem>>, vector<2x64xf32>
    tpu.vector_store %arg7[%c0_11, %c0_12], %17 {strides = array<i32>} : memref<2x64xf32, #tpu.memory_space<vmem>>, vector<2x64xf32>,
    return
  }
  func.func @transform_0(%arg0: i32) -> (i32, i32) {
    %c0_i32 = arith.constant 0 : i32
    %c0_i32_0 = arith.constant 0 : i32
    return %arg0, %c0_i32 : i32, i32
  }
  func.func @transform_1(%arg0: i32) -> (i32, i32) {
    %c0_i32 = arith.constant 0 : i32
    %c0_i32_0 = arith.constant 0 : i32
    %c0_i32_1 = arith.constant 0 : i32
    return %c0_i32, %c0_i32_0 : i32, i32
  }
  func.func @transform_2(%arg0: i32) -> i32 {
    %c0_i32 = arith.constant 0 : i32
    %c0_i32_0 = arith.constant 0 : i32
    return %c0_i32 : i32
  }
  func.func @transform_3(%arg0: i32) -> (i32, i32) {
    %c0_i32 = arith.constant 0 : i32
    %c0_i32_0 = arith.constant 0 : i32
    %c0_i32_1 = arith.constant 0 : i32
    return %c0_i32, %c0_i32_0 : i32, i32
  }
  func.func @transform_4(%arg0: i32) -> (i32, i32) {
    %c0_i32 = arith.constant 0 : i32
    %c0_i32_0 = arith.constant 0 : i32
    %c0_i32_1 = arith.constant 0 : i32
    return %c0_i32, %c0_i32_0 : i32, i32
  }
  func.func @transform_5(%arg0: i32) -> i32 {
    %c0_i32 = arith.constant 0 : i32
    %c0_i32_0 = arith.constant 0 : i32
    return %c0_i32 : i32
  }
  func.func @transform_6(%arg0: i32) -> (i32, i32) {
    %c0_i32 = arith.constant 0 : i32
    %c0_i32_0 = arith.constant 0 : i32
    return %arg0, %c0_i32 : i32, i32
  }
}

</mosaic_0001>

<llo_original>
// kernel: cnn_forward.1
$region0: #{cnn_forward.1}
  #allocation0 [shape = 'u32[]', space=smem, size = 0x4, offset = 0x4, fixed_abs, tag = 'smem constant byte address 0x4 - core index']
  #allocation1 [shape = 'u32[72,128]{1,0:T(1,128)}', space=vmem, size = 0x9000, scoped, tag = 'internal scratch']
  #allocation2 [shape = 'f32[1]{0:T(128)S(6)}', space=smem, size = 0x200, scoped, tag = 'scoped memory for cnn_forward.1']
  #allocation3 [shape = 'f32[1]{0:T(128)S(6)}', space=smem, size = 0x200, scoped, tag = 'scoped memory for cnn_forward.1']
  %s0 = inlined_call_operand.vmem [shape: f32[2,64], index: 0, kind: input, shape index: {}]
  %s1 = inlined_call_operand.vmem [shape: f32[64,16], index: 1, kind: input, shape index: {}]
  %s2 = inlined_call_operand.<no memory space> [shape: f32[1], index: 2, kind: input, shape index: {}]
  %s3 = inlined_call_operand.vmem [shape: f32[16,64], index: 3, kind: input, shape index: {}]
  %s4 = inlined_call_operand.vmem [shape: f32[1,64], index: 4, kind: input, shape index: {}]
  %s5 = inlined_call_operand.<no memory space> [shape: f32[1], index: 5, kind: input, shape index: {}]
  %s6 = inlined_call_operand.hbm [shape: f32[2,64], index: 6, kind: output, shape index: {}]
  %s7 = sld [smem:[#allocation0]]
  $region34: #{cnn_forward.1} parent=0
    _
  %s9 = ssub.s32 1, %s7
  %s10 = scalar_select 0, %s9, %s7
  %11 = sst [smem:[#allocation2]] %s2
  %12 = sst [smem:[#allocation3]] %s5
  $region1: #{cnn_forward.1} parent=0
    #allocation4 [shape = 'u8[1024]{0}', space=vmem, size = 0x400, scoped, tag = 'output window, operand 0, single buffered']
    #allocation5 [shape = 's32[1]{0}', space=sflag, size = 0x4, scoped, tag = 'scoped memory for cnn_forward.1']
    %13 = vsyncpa [#allocation5], 0
    // Predicated region
    $region2: #{cnn_forward.1} parent=1 // pred_check
      _
    $region3: #{cnn_forward.1} parent=1 // pred_check_branch
      %15 = sbr.rel (0) target = $region5
    $region4: #{cnn_forward.1} parent=1 // pred_region
      _
    $region5: #{cnn_forward.1} parent=1 // pred_fallthru
      _
    // Predicated region
    $region6: #{cnn_forward.1} parent=1 // pred_check
      _
    $region7: #{cnn_forward.1} parent=1 // pred_check_branch
      %17 = sbr.rel (0) target = $region9
    $region8: #{cnn_forward.1} parent=1 // pred_region
      _
    $region9: #{cnn_forward.1} parent=1 // pred_fallthru
      _
    // Predicated region
    $region10: #{cnn_forward.1} parent=1 // pred_check
      _
    $region11: #{cnn_forward.1} parent=1 // pred_check_branch
      %19 = sbr.rel (0) target = $region13
    $region12: #{cnn_forward.1} parent=1 // pred_region
      _
    $region13: #{cnn_forward.1} parent=1 // pred_fallthru
      _
    // Predicated region
    $region14: #{cnn_forward.1} parent=1 // pred_check
      _
    $region15: #{cnn_forward.1} parent=1 // pred_check_branch
      %21 = sbr.rel (0) target = $region17
    $region16: #{cnn_forward.1} parent=1 // pred_region
      _
    $region17: #{cnn_forward.1} parent=1 // pred_fallthru
      _
    // Predicated region
    $region18: #{cnn_forward.1} parent=1 // pred_check
      _
    $region19: #{cnn_forward.1} parent=1 // pred_check_branch
      %23 = sbr.rel (0) target = $region21
    $region20: #{cnn_forward.1} parent=1 // pred_region
      _
    $region21: #{cnn_forward.1} parent=1 // pred_fallthru
      _
    // Predicated region
    $region22: #{cnn_forward.1} parent=1 // pred_check
      _
    $region23: #{cnn_forward.1} parent=1 // pred_check_branch
      %25 = sbr.rel (0) target = $region25
    $region24: #{cnn_forward.1} parent=1 // pred_region
      _
    $region25: #{cnn_forward.1} parent=1 // pred_fallthru
      _
    %v26 = vld [vmem:[%s0] sm:$0x3]
    %v27 = vld [vmem:[%s1] sm:$0xff]
    %v28 = vld [vmem:[%s1 + $0x8] sm:$0xff]
    %v29 = vld [vmem:[%s1 + $0x10] sm:$0xff]
    %v30 = vld [vmem:[%s1 + $0x18] sm:$0xff]
    %v31 = vld [vmem:[%s1 + $0x20] sm:$0xff]
    %v32 = vld [vmem:[%s1 + $0x28] sm:$0xff]
    %v33 = vld [vmem:[%s1 + $0x30] sm:$0xff]
    %v34 = vld [vmem:[%s1 + $0x38] sm:$0xff]
    %s35 = sld [smem:[#allocation2]]
    %v36 = vstv %s35
    %vm37 = vcmask 523264
    %v39 = vsel %vm37, %v26, 0
    %41 = vmatpush.msra.mxu0 0.0
    %42 = vmatpush.msra.mxu0 0.0
    %43 = vmatpush.msra.mxu0 0.0
    %44 = vmatpush.msra.mxu0 0.0
    %45 = vmatpush.msra.mxu0 0.0
    %46 = vmatpush.msra.mxu0 0.0
    %47 = vmatpush.msra.mxu0 0.0
    %48 = vmatpush.msra.mxu0 0.0
    %49 = vmatpush.msra.mxu0 %v34
    %50 = vmatpush.msra.mxu0 %v33
    %51 = vmatpush.msra.mxu0 %v32
    %52 = vmatpush.msra.mxu0 %v31
    %53 = vmatpush.msra.mxu0 %v30
    %54 = vmatpush.msra.mxu0 %v29
    %55 = vmatpush.msra.mxu0 %v28
    %56 = vmatpush.msra.mxu0 %v27
    %57 = vmatmul.f32.gmra.mxu0 %v39
    %v58 = vpop.f32.mrf.mxu0
    %v59 = vadd.f32 %v36, %v58
    %60 = vdwg.mxu0
    %v61 = vtanh.pop %v59
    %v62 = vld [vmem:[%s3] sm:$0xff]
    %v63 = vld [vmem:[%s3 + $0x8] sm:$0xff]
    %v64 = vld [vmem:[%s4] sm:$0x1]
    %v66 = vperm.slane %v64, 0
    %vm68 = vcmask 130048
    %v70 = vsel %vm68, %v61, 0
    %72 = vmatpush.msra.mxu0 0.0
    %73 = vmatpush.msra.mxu0 0.0
    %74 = vmatpush.msra.mxu0 0.0
    %75 = vmatpush.msra.mxu0 0.0
    %76 = vmatpush.msra.mxu0 0.0
    %77 = vmatpush.msra.mxu0 0.0
    %78 = vmatpush.msra.mxu0 0.0
    %79 = vmatpush.msra.mxu0 0.0
    %80 = vmatpush.msra.mxu0 0.0
    %81 = vmatpush.msra.mxu0 0.0
    %82 = vmatpush.msra.mxu0 0.0
    %83 = vmatpush.msra.mxu0 0.0
    %84 = vmatpush.msra.mxu0 0.0
    %85 = vmatpush.msra.mxu0 0.0
    %86 = vmatpush.msra.mxu0 %v63
    %87 = vmatpush.msra.mxu0 %v62
    %88 = vmatmul.f32.gmra.mxu0 %v70
    %v89 = vpop.f32.mrf.mxu0
    %v90 = vadd.f32 %v66, %v89
    %91 = vdwg.mxu0
    %s92 = sld [smem:[#allocation3]]
    %vm93 = vcmp.gt.f32.partialorder %v90, 0.0
    %v94 = vstv %s92
    %v95 = vmul.f32 %v94, %v90
    %v96 = vsel %vm93, %v90, %v95
    %vm97 = vcmask 517120
    %98 = vst.msk [vmem:[#allocation4] sm:$0x3] %vm97, %v96
    // Predicated region
    $region26: #{cnn_forward.1} parent=1 // pred_check
      _
    $region27: #{cnn_forward.1} parent=1 // pred_check_branch
      %100 = sbr.rel (0) target = $region29
    $region28: #{cnn_forward.1} parent=1 // pred_region
      %102 = vsyncadd [#allocation5], 0
      %s104 = sshll.u32 [#allocation4], 4
      %s105 = int_to_ptr.vmem [resolvable:$true] %s104
      %s106 = sshll.u32 %s6, 4
      %s107 = int_to_ptr.hbm [resolvable:$true] %s106
      %109 = dma.vmem_to_hbm [thread:$0]  %s105, 32, %s107, [#allocation5]
    $region29: #{cnn_forward.1} parent=1 // pred_fallthru
      _
    // Predicated region
    $region30: #{cnn_forward.1} parent=1 // pred_check
      _
    $region31: #{cnn_forward.1} parent=1 // pred_check_branch
      %111 = sbr.rel (0) target = $region33
    $region32: #{cnn_forward.1} parent=1 // pred_region
      %113 = dma.done [#allocation5], 32
    $region33: #{cnn_forward.1} parent=1 // pred_fallthru
      _
    %114 = vsyncpa [#allocation5], 1

</llo_original>
